<compile_context>
chip_gen: v5e
topology: v5e:2x2
jax: 0.10.0
libtpu: 0.0.40
codegen_flags: <defaults>
</compile_context>

<pallas_src>
import jax
import jax.numpy as jnp
from jax.experimental import pallas as pl
from jax.experimental.pallas import tpu as pltpu

NEG_SLOPE = 0.01  # nn.LeakyReLU() default

# NetworkStructure
DIMS = (64, 32, 16, 8)
D0, D1, D2, D3 = DIMS

# ---- static packing layout ----------------------------------------------
# Weights stored transposed vs. nn.Linear, i.e. (in, out), stacked along rows
# of one (168, 64) buffer. mu/logvar heads fused into a single (16, 16) block.
# Biases live in a second (6, 64) buffer, one per row.
_W_ROWS = (
    ("e0", D0, D1),       # rows   0: 64, cols 0:32   Encoder layer0
    ("e1", D1, D2),       # rows  64: 96, cols 0:16   Encoder layer1
    ("hd", D2, 2 * D3),   # rows  96:112, cols 0:16   fused [mean | var] head
    ("d0", D3, D2),       # rows 112:120, cols 0:16   Decoder layerhat3
    ("d1", D2, D1),       # rows 120:136, cols 0:32   Decoder layerhat2
    ("d2", D1, D0),       # rows 136:168, cols 0:64   Decoder layerhat1 (no relu)
)
_W_OFFS = {}
_off = 0
for _name, _fin, _fout in _W_ROWS:
    _W_OFFS[_name] = (_off, _fin, _fout)
    _off += _fin
W_TOTAL_ROWS = _off            # 168
W_COLS = D0                    # 64
_B_IDX = {name: i for i, (name, _, _) in enumerate(_W_ROWS)}
B_ROWS = len(_W_ROWS)          # 6


def _leaky_relu(x):
    return jnp.where(x > 0, x, NEG_SLOPE * x)


def _round_up(n, m):
    return ((n + m - 1) // m) * m


def vae_mlp_kernel(x_ref, eps_ref, w_ref, b_ref,
                   mulv_out_ref, out_out_ref, feat_out_ref):
    # Packed parameters (VMEM-resident; constant block across grid steps).
    W = w_ref[...]     # (168, 64)
    Bv = b_ref[...]    # (6, 64)

    def wgt(name):
        off, fin, fout = _W_OFFS[name]
        return W[off:off + fin, 0:fout]

    def bias(name):
        _, _, fout = _W_OFFS[name]
        i = _B_IDX[name]
        return Bv[i:i + 1, 0:fout]

    def linear(v, name):
        return jnp.dot(v, wgt(name), preferred_element_type=jnp.float32) + bias(name)

    x = x_ref[...]                                   # (TB, 64)

    # ---- Encoder (LeakyReLU after every encoder layer) ----
    h = _leaky_relu(linear(x, "e0"))                 # (TB, 32)
    h = _leaky_relu(linear(h, "e1"))                 # (TB, 16)
    feat_out_ref[...] = h

    # ---- Fused heads: one matmul -> [mu | logvar] ----
    y = linear(h, "hd")                              # (TB, 16)
    mulv_out_ref[...] = y
    mu = y[:, 0:D3]
    logvar = y[:, D3:2 * D3]

    # ---- Reparameterize: mu + eps * exp(0.5 * logvar) ----
    z = mu + eps_ref[...] * jnp.exp(0.5 * logvar)    # (TB, 8)

    # ---- Decoder (LeakyReLU after all but the last layer) ----
    d = _leaky_relu(linear(z, "d0"))                 # (TB, 16)
    d = _leaky_relu(linear(d, "d1"))                 # (TB, 32)
    out_out_ref[...] = linear(d, "d2")               # (TB, 64)


def vae_mlp_forward(x, eps, params, tb_max=256):
    """Returns [input_data, mean_latent, var_latent, output, feature]."""
    B = x.shape[0]
    x_flat = x.reshape(B, -1).astype(jnp.float32)    # == input_data.view(B, -1)
    assert x_flat.shape[1] == D0
    eps = eps.astype(jnp.float32)

    # Batch tiling: pad to a multiple of TB (TB multiple of 8, capped).
    TB = min(_round_up(max(B, 1), 8), tb_max)
    Bp = _round_up(B, TB)
    n_tiles = Bp // TB
    if Bp != B:
        pad = Bp - B
        x_p = jnp.pad(x_flat, ((0, pad), (0, 0)))
        eps_p = jnp.pad(eps, ((0, pad), (0, 0)))
    else:
        x_p, eps_p = x_flat, eps

    out_shapes = (
        jax.ShapeDtypeStruct((Bp, 2 * D3), jnp.float32),  # [mu | logvar]
        jax.ShapeDtypeStruct((Bp, D0), jnp.float32),      # output
        jax.ShapeDtypeStruct((Bp, D2), jnp.float32),      # feature
    )

    grid_spec = pltpu.PrefetchScalarGridSpec(
        num_scalar_prefetch=0,
        grid=(n_tiles,),
        in_specs=[
            pl.BlockSpec((TB, D0), lambda i: (i, 0)),               # x tile
            pl.BlockSpec((TB, D3), lambda i: (i, 0)),               # eps tile
            pl.BlockSpec((W_TOTAL_ROWS, W_COLS), lambda i: (0, 0)),  # packed W (resident)
            pl.BlockSpec((B_ROWS, W_COLS), lambda i: (0, 0)),        # packed b (resident)
        ],
        out_specs=[
            pl.BlockSpec((TB, 2 * D3), lambda i: (i, 0)),
            pl.BlockSpec((TB, D0), lambda i: (i, 0)),
            pl.BlockSpec((TB, D2), lambda i: (i, 0)),
        ],
    )

    mulv, output, feature = pl.pallas_call(
        vae_mlp_kernel,
        out_shape=out_shapes,
        grid_spec=grid_spec,
        compiler_params=pltpu.CompilerParams(
            dimension_semantics=("parallel",),
            vmem_limit_bytes=32 * 1024 * 1024,
        ),
    )(x_p, eps_p, params["w_pack"], params["b_pack"])

    mean_latent = mulv[:B, :D3]
    var_latent = mulv[:B, D3:2 * D3]
    return [x_flat, mean_latent, var_latent, output[:B], feature[:B]]


def init_params(key):
    """Deterministic synthetic init matching nn.Linear's U(-1/sqrt(fan_in), ...)."""
    def lin(k, fan_in, fan_out):
        kw, kb = jax.random.split(k)
        bound = 1.0 / jnp.sqrt(fan_in)
        w = jax.random.uniform(kw, (fan_in, fan_out), jnp.float32, -bound, bound)
        b = jax.random.uniform(kb, (fan_out,), jnp.float32, -bound, bound)
        return w, b

    keys = jax.random.split(key, 7)
    w_e0, b_e0 = lin(keys[0], D0, D1)   # Encoder layer0
    w_e1, b_e1 = lin(keys[1], D1, D2)   # Encoder layer1
    w_mu, b_mu = lin(keys[2], D2, D3)   # mean_head
    w_lv, b_lv = lin(keys[3], D2, D3)   # var_head
    w_d0, b_d0 = lin(keys[4], D3, D2)   # Decoder layerhat3
    w_d1, b_d1 = lin(keys[5], D2, D1)   # Decoder layerhat2
    w_d2, b_d2 = lin(keys[6], D1, D0)   # Decoder layerhat1 (no relu)

    weights = {
        "e0": w_e0, "e1": w_e1,
        "hd": jnp.concatenate([w_mu, w_lv], axis=1),   # fused heads (16, 16)
        "d0": w_d0, "d1": w_d1, "d2": w_d2,
    }
    biases = {
        "e0": b_e0, "e1": b_e1,
        "hd": jnp.concatenate([b_mu, b_lv], axis=0),   # (16,)
        "d0": b_d0, "d1": b_d1, "d2": b_d2,
    }

    w_pack = jnp.zeros((W_TOTAL_ROWS, W_COLS), jnp.float32)
    b_pack = jnp.zeros((B_ROWS, W_COLS), jnp.float32)
    for idx, (name, fin, fout) in enumerate(_W_ROWS):
        off = _W_OFFS[name][0]
        w_pack = w_pack.at[off:off + fin, 0:fout].set(weights[name])
        b_pack = b_pack.at[idx, 0:fout].set(biases[name])
    return dict(w_pack=w_pack, b_pack=b_pack)


def _reference_forward(x, eps, params):
    """Pure-JAX reference using the same packed params (correctness oracle)."""
    Wp, Bp = params["w_pack"], params["b_pack"]

    def unp(name):
        off, fin, fout = _W_OFFS[name]
        return Wp[off:off + fin, 0:fout], Bp[_B_IDX[name], 0:fout]

    def leaky(v):
        return jnp.where(v > 0, v, NEG_SLOPE * v)

    xf = x.reshape(x.shape[0], -1).astype(jnp.float32)
    w, b = unp("e0"); h = leaky(xf @ w + b)
    w, b = unp("e1"); h = leaky(h @ w + b)
    feat = h
    w, b = unp("hd"); y = h @ w + b
    mu, lv = y[:, :D3], y[:, D3:]
    z = mu + eps * jnp.exp(0.5 * lv)
    w, b = unp("d0"); d = leaky(z @ w + b)
    w, b = unp("d1"); d = leaky(d @ w + b)
    w, b = unp("d2"); out = d @ w + b
    return xf, mu, lv, out, feat


if __name__ == "__main__":
    key = jax.random.PRNGKey(0)
    k_x, k_eps, k_p = jax.random.split(key, 3)

    B = 4
    x = jax.random.normal(k_x, (B, 8, 8), jnp.float32)      # flattens to (B, 64)
    eps = jax.random.normal(k_eps, (B, D3), jnp.float32)    # reparameterize noise
    params = init_params(k_p)

    outs = vae_mlp_forward(x, eps, params)
    outs = jax.block_until_ready(outs)
    input_data, mean_latent, var_latent, output, feature = outs

    assert input_data.shape == (B, 64)
    assert mean_latent.shape == (B, 8)
    assert var_latent.shape == (B, 8)
    assert output.shape == (B, 64)
    assert feature.shape == (B, 16)

    # Correctness check against a pure-JAX reference.
    r_in, r_mu, r_lv, r_out, r_feat = _reference_forward(x, eps, params)
    assert jnp.allclose(input_data, r_in, atol=1e-6)
    assert jnp.allclose(mean_latent, r_mu, atol=1e-5)
    assert jnp.allclose(var_latent, r_lv, atol=1e-5)
    assert jnp.allclose(feature, r_feat, atol=1e-5)
    assert jnp.allclose(output, r_out, atol=1e-4)

    print("KERNEL_OK")
</pallas_src>

<mosaic_0001>
module attributes {stable_mosaic.version = 11 : i64} {
  func.func @vae_mlp_kernel(%arg0: i32, %arg1: memref<8x64xf32, #tpu.memory_space<vmem>>, %arg2: memref<8x8xf32, #tpu.memory_space<vmem>>, %arg3: memref<168x64xf32, #tpu.memory_space<vmem>>, %arg4: memref<6x64xf32, #tpu.memory_space<vmem>>, %arg5: memref<8x16xf32, #tpu.memory_space<vmem>>, %arg6: memref<8x64xf32, #tpu.memory_space<vmem>>, %arg7: memref<8x16xf32, #tpu.memory_space<vmem>>) attributes {dimension_semantics = [#tpu.dimension_semantics<parallel>], iteration_bounds = array<i64: 1>, scalar_prefetch = 0 : i64, scratch_operands = 0 : i64, tpu.core_type = #tpu.core_type<tc>, window_params = [{transform_indices = @transform_0, window_bounds = array<i64: 8, 64>}, {transform_indices = @transform_1, window_bounds = array<i64: 8, 8>}, {pipeline_mode = #tpu.pipeline_mode<synchronous>, transform_indices = @transform_2, window_bounds = array<i64: 168, 64>}, {pipeline_mode = #tpu.pipeline_mode<synchronous>, transform_indices = @transform_3, window_bounds = array<i64: 6, 64>}, {transform_indices = @transform_4, window_bounds = array<i64: 8, 16>}, {transform_indices = @transform_5, window_bounds = array<i64: 8, 64>}, {transform_indices = @transform_6, window_bounds = array<i64: 8, 16>}]} {
    %c0 = arith.constant 0 : index
    %c0_0 = arith.constant 0 : index
    %0 = vector.load %arg3[%c0, %c0_0] : memref<168x64xf32, #tpu.memory_space<vmem>>, vector<168x64xf32>
    %c0_1 = arith.constant 0 : index
    %c0_2 = arith.constant 0 : index
    %1 = vector.load %arg4[%c0_1, %c0_2] : memref<6x64xf32, #tpu.memory_space<vmem>>, vector<6x64xf32>
    %c0_3 = arith.constant 0 : index
    %c0_4 = arith.constant 0 : index
    %2 = vector.load %arg1[%c0_3, %c0_4] : memref<8x64xf32, #tpu.memory_space<vmem>>, vector<8x64xf32>
    %3 = vector.extract_strided_slice %0 {offsets = [0, 0], sizes = [64, 32], strides = [1, 1]} : vector<168x64xf32> to vector<64x32xf32>
    %cst = arith.constant dense<0.000000e+00> : vector<8x32xf32>
    %4 = tpu.matmul %2, %3, %cst {dimension_numbers = #tpu.dot_dimension_numbers<[1], [0], [0], [1], [0, 0, 1, 1], [], []>} : vector<8x64xf32>, vector<64x32xf32>, vector<8x32xf32> -> vector<8x32xf32>
    %5 = vector.extract_strided_slice %1 {offsets = [0, 0], sizes = [1, 32], strides = [1, 1]} : vector<6x64xf32> to vector<1x32xf32>
    %6 = vector.broadcast %5 : vector<1x32xf32> to vector<8x32xf32>
    %7 = arith.addf %4, %6 : vector<8x32xf32>
    %cst_5 = arith.constant 0.000000e+00 : f32
    %8 = vector.broadcast %cst_5 : f32 to vector<8x32xf32>
    %9 = arith.cmpf ogt, %7, %8 : vector<8x32xf32>
    %cst_6 = arith.constant 0.00999999977 : f32
    %10 = vector.broadcast %cst_6 : f32 to vector<8x32xf32>
    %11 = arith.mulf %10, %7 : vector<8x32xf32>
    %12 = arith.select %9, %7, %11 : vector<8x32xi1>, vector<8x32xf32>
    %13 = vector.extract_strided_slice %0 {offsets = [64, 0], sizes = [32, 16], strides = [1, 1]} : vector<168x64xf32> to vector<32x16xf32>
    %cst_7 = arith.constant dense<0.000000e+00> : vector<8x16xf32>
    %14 = tpu.matmul %12, %13, %cst_7 {dimension_numbers = #tpu.dot_dimension_numbers<[1], [0], [0], [1], [0, 0, 1, 1], [], []>} : vector<8x32xf32>, vector<32x16xf32>, vector<8x16xf32> -> vector<8x16xf32>
    %15 = vector.extract_strided_slice %1 {offsets = [1, 0], sizes = [1, 16], strides = [1, 1]} : vector<6x64xf32> to vector<1x16xf32>
    %16 = vector.broadcast %15 : vector<1x16xf32> to vector<8x16xf32>
    %17 = arith.addf %14, %16 : vector<8x16xf32>
    %cst_8 = arith.constant 0.000000e+00 : f32
    %18 = vector.broadcast %cst_8 : f32 to vector<8x16xf32>
    %19 = arith.cmpf ogt, %17, %18 : vector<8x16xf32>
    %cst_9 = arith.constant 0.00999999977 : f32
    %20 = vector.broadcast %cst_9 : f32 to vector<8x16xf32>
    %21 = arith.mulf %20, %17 : vector<8x16xf32>
    %22 = arith.select %19, %17, %21 : vector<8x16xi1>, vector<8x16xf32>
    %c0_10 = arith.constant 0 : index
    %c0_11 = arith.constant 0 : index
    %23 = vector.load %arg7[%c0_10, %c0_11] : memref<8x16xf32, #tpu.memory_space<vmem>>, vector<8x16xf32>
    tpu.vector_store %arg7[%c0_10, %c0_11], %22 {strides = array<i32>} : memref<8x16xf32, #tpu.memory_space<vmem>>, vector<8x16xf32>,
    %24 = vector.extract_strided_slice %0 {offsets = [96, 0], sizes = [16, 16], strides = [1, 1]} : vector<168x64xf32> to vector<16x16xf32>
    %cst_12 = arith.constant dense<0.000000e+00> : vector<8x16xf32>
    %25 = tpu.matmul %22, %24, %cst_12 {dimension_numbers = #tpu.dot_dimension_numbers<[1], [0], [0], [1], [0, 0, 1, 1], [], []>} : vector<8x16xf32>, vector<16x16xf32>, vector<8x16xf32> -> vector<8x16xf32>
    %26 = vector.extract_strided_slice %1 {offsets = [2, 0], sizes = [1, 16], strides = [1, 1]} : vector<6x64xf32> to vector<1x16xf32>
    %27 = vector.broadcast %26 : vector<1x16xf32> to vector<8x16xf32>
    %28 = arith.addf %25, %27 : vector<8x16xf32>
    %c0_13 = arith.constant 0 : index
    %c0_14 = arith.constant 0 : index
    %29 = vector.load %arg5[%c0_13, %c0_14] : memref<8x16xf32, #tpu.memory_space<vmem>>, vector<8x16xf32>
    tpu.vector_store %arg5[%c0_13, %c0_14], %28 {strides = array<i32>} : memref<8x16xf32, #tpu.memory_space<vmem>>, vector<8x16xf32>,
    %30 = vector.extract_strided_slice %28 {offsets = [0, 0], sizes = [8, 8], strides = [1, 1]} : vector<8x16xf32> to vector<8x8xf32>
    %31 = vector.extract_strided_slice %28 {offsets = [0, 8], sizes = [8, 8], strides = [1, 1]} : vector<8x16xf32> to vector<8x8xf32>
    %c0_15 = arith.constant 0 : index
    %c0_16 = arith.constant 0 : index
    %32 = vector.load %arg2[%c0_15, %c0_16] : memref<8x8xf32, #tpu.memory_space<vmem>>, vector<8x8xf32>
    %cst_17 = arith.constant 5.000000e-01 : f32
    %33 = vector.broadcast %cst_17 : f32 to vector<8x8xf32>
    %34 = arith.mulf %33, %31 : vector<8x8xf32>
    %35 = math.exp %34 : vector<8x8xf32>
    %36 = arith.mulf %32, %35 : vector<8x8xf32>
    %37 = arith.addf %30, %36 : vector<8x8xf32>
    %38 = vector.extract_strided_slice %0 {offsets = [112, 0], sizes = [8, 16], strides = [1, 1]} : vector<168x64xf32> to vector<8x16xf32>
    %cst_18 = arith.constant dense<0.000000e+00> : vector<8x16xf32>
    %39 = tpu.matmul %37, %38, %cst_18 {dimension_numbers = #tpu.dot_dimension_numbers<[1], [0], [0], [1], [0, 0, 1, 1], [], []>} : vector<8x8xf32>, vector<8x16xf32>, vector<8x16xf32> -> vector<8x16xf32>
    %40 = vector.extract_strided_slice %1 {offsets = [3, 0], sizes = [1, 16], strides = [1, 1]} : vector<6x64xf32> to vector<1x16xf32>
    %41 = vector.broadcast %40 : vector<1x16xf32> to vector<8x16xf32>
    %42 = arith.addf %39, %41 : vector<8x16xf32>
    %cst_19 = arith.constant 0.000000e+00 : f32
    %43 = vector.broadcast %cst_19 : f32 to vector<8x16xf32>
    %44 = arith.cmpf ogt, %42, %43 : vector<8x16xf32>
    %cst_20 = arith.constant 0.00999999977 : f32
    %45 = vector.broadcast %cst_20 : f32 to vector<8x16xf32>
    %46 = arith.mulf %45, %42 : vector<8x16xf32>
    %47 = arith.select %44, %42, %46 : vector<8x16xi1>, vector<8x16xf32>
    %48 = vector.extract_strided_slice %0 {offsets = [120, 0], sizes = [16, 32], strides = [1, 1]} : vector<168x64xf32> to vector<16x32xf32>
    %cst_21 = arith.constant dense<0.000000e+00> : vector<8x32xf32>
    %49 = tpu.matmul %47, %48, %cst_21 {dimension_numbers = #tpu.dot_dimension_numbers<[1], [0], [0], [1], [0, 0, 1, 1], [], []>} : vector<8x16xf32>, vector<16x32xf32>, vector<8x32xf32> -> vector<8x32xf32>
    %50 = vector.extract_strided_slice %1 {offsets = [4, 0], sizes = [1, 32], strides = [1, 1]} : vector<6x64xf32> to vector<1x32xf32>
    %51 = vector.broadcast %50 : vector<1x32xf32> to vector<8x32xf32>
    %52 = arith.addf %49, %51 : vector<8x32xf32>
    %cst_22 = arith.constant 0.000000e+00 : f32
    %53 = vector.broadcast %cst_22 : f32 to vector<8x32xf32>
    %54 = arith.cmpf ogt, %52, %53 : vector<8x32xf32>
    %cst_23 = arith.constant 0.00999999977 : f32
    %55 = vector.broadcast %cst_23 : f32 to vector<8x32xf32>
    %56 = arith.mulf %55, %52 : vector<8x32xf32>
    %57 = arith.select %54, %52, %56 : vector<8x32xi1>, vector<8x32xf32>
    %58 = vector.extract_strided_slice %0 {offsets = [136, 0], sizes = [32, 64], strides = [1, 1]} : vector<168x64xf32> to vector<32x64xf32>
    %cst_24 = arith.constant dense<0.000000e+00> : vector<8x64xf32>
    %59 = tpu.matmul %57, %58, %cst_24 {dimension_numbers = #tpu.dot_dimension_numbers<[1], [0], [0], [1], [0, 0, 1, 1], [], []>} : vector<8x32xf32>, vector<32x64xf32>, vector<8x64xf32> -> vector<8x64xf32>
    %60 = vector.extract_strided_slice %1 {offsets = [5, 0], sizes = [1, 64], strides = [1, 1]} : vector<6x64xf32> to vector<1x64xf32>
    %61 = vector.broadcast %60 : vector<1x64xf32> to vector<8x64xf32>
    %62 = arith.addf %59, %61 : vector<8x64xf32>
    %c0_25 = arith.constant 0 : index
    %c0_26 = arith.constant 0 : index
    %63 = vector.load %arg6[%c0_25, %c0_26] : memref<8x64xf32, #tpu.memory_space<vmem>>, vector<8x64xf32>
    tpu.vector_store %arg6[%c0_25, %c0_26], %62 {strides = array<i32>} : memref<8x64xf32, #tpu.memory_space<vmem>>, vector<8x64xf32>,
    return
  }
  func.func @transform_0(%arg0: i32) -> (i32, i32) {
    %c0_i32 = arith.constant 0 : i32
    %c0_i32_0 = arith.constant 0 : i32
    return %arg0, %c0_i32 : i32, i32
  }
  func.func @transform_1(%arg0: i32) -> (i32, i32) {
    %c0_i32 = arith.constant 0 : i32
    %c0_i32_0 = arith.constant 0 : i32
    return %arg0, %c0_i32 : i32, i32
  }
  func.func @transform_2(%arg0: i32) -> (i32, i32) {
    %c0_i32 = arith.constant 0 : i32
    %c0_i32_0 = arith.constant 0 : i32
    %c0_i32_1 = arith.constant 0 : i32
    return %c0_i32, %c0_i32_0 : i32, i32
  }
  func.func @transform_3(%arg0: i32) -> (i32, i32) {
    %c0_i32 = arith.constant 0 : i32
    %c0_i32_0 = arith.constant 0 : i32
    %c0_i32_1 = arith.constant 0 : i32
    return %c0_i32, %c0_i32_0 : i32, i32
  }
  func.func @transform_4(%arg0: i32) -> (i32, i32) {
    %c0_i32 = arith.constant 0 : i32
    %c0_i32_0 = arith.constant 0 : i32
    return %arg0, %c0_i32 : i32, i32
  }
  func.func @transform_5(%arg0: i32) -> (i32, i32) {
    %c0_i32 = arith.constant 0 : i32
    %c0_i32_0 = arith.constant 0 : i32
    return %arg0, %c0_i32 : i32, i32
  }
  func.func @transform_6(%arg0: i32) -> (i32, i32) {
    %c0_i32 = arith.constant 0 : i32
    %c0_i32_0 = arith.constant 0 : i32
    return %arg0, %c0_i32 : i32, i32
  }
}

</mosaic_0001>

<llo_original>
// kernel: tpu_custom_call.1
$region0: #{tpu_custom_call.1}
  #allocation0 [shape = 'u32[]', space=smem, size = 0x4, offset = 0x4, fixed_abs, tag = 'smem constant byte address 0x4 - core index']
  #allocation1 [shape = 'u32[72,128]{1,0:T(1,128)}', space=vmem, size = 0x9000, scoped, tag = 'internal scratch']
  %s0 = inlined_call_operand.vmem [shape: f32[8,64], index: 0, kind: input, shape index: {}]
  %s1 = inlined_call_operand.vmem [shape: f32[8,8], index: 1, kind: input, shape index: {}]
  %s2 = inlined_call_operand.vmem [shape: f32[168,64], index: 2, kind: input, shape index: {}]
  %s3 = inlined_call_operand.vmem [shape: f32[6,64], index: 3, kind: input, shape index: {}]
  %s4 = inlined_call_operand.hbm [shape: f32[8,16], index: 4, kind: output, shape index: {0}]
  %s5 = inlined_call_operand.hbm [shape: f32[8,64], index: 5, kind: output, shape index: {1}]
  %s6 = inlined_call_operand.hbm [shape: f32[8,16], index: 6, kind: output, shape index: {2}]
  %7 = xla_tuple %s4, %s5, %s6
  %s8 = sld [smem:[#allocation0]]
  $region42: #{tpu_custom_call.1} parent=0
    _
  %s10 = ssub.s32 1, %s8
  %s11 = scalar_select 0, %s10, %s8
  $region1: #{tpu_custom_call.1} parent=0
    #allocation2 [shape = 'u8[4096]{0}', space=vmem, size = 0x1000, scoped, tag = 'output window, operand 0, single buffered']
    #allocation3 [shape = 's32[1]{0}', space=sflag, size = 0x4, scoped, tag = 'scoped memory for tpu_custom_call.1']
    #allocation4 [shape = 'u8[4096]{0}', space=vmem, size = 0x1000, scoped, tag = 'output window, operand 1, single buffered']
    #allocation5 [shape = 's32[1]{0}', space=sflag, size = 0x4, scoped, tag = 'scoped memory for tpu_custom_call.1']
    #allocation6 [shape = 'u8[4096]{0}', space=vmem, size = 0x1000, scoped, tag = 'output window, operand 2, single buffered']
    %12 = vsyncpa [#allocation3], 0
    %13 = vsyncpa [#allocation5], 0
    // Predicated region
    $region2: #{tpu_custom_call.1} parent=1 // pred_check
      _
    $region3: #{tpu_custom_call.1} parent=1 // pred_check_branch
      %15 = sbr.rel (0) target = $region5
    $region4: #{tpu_custom_call.1} parent=1 // pred_region
      _
    $region5: #{tpu_custom_call.1} parent=1 // pred_fallthru
      _
    // Predicated region
    $region6: #{tpu_custom_call.1} parent=1 // pred_check
      _
    $region7: #{tpu_custom_call.1} parent=1 // pred_check_branch
      %17 = sbr.rel (0) target = $region9
    $region8: #{tpu_custom_call.1} parent=1 // pred_region
      _
    $region9: #{tpu_custom_call.1} parent=1 // pred_fallthru
      _
    // Predicated region
    $region10: #{tpu_custom_call.1} parent=1 // pred_check
      _
    $region11: #{tpu_custom_call.1} parent=1 // pred_check_branch
      %19 = sbr.rel (0) target = $region13
    $region12: #{tpu_custom_call.1} parent=1 // pred_region
      _
    $region13: #{tpu_custom_call.1} parent=1 // pred_fallthru
      _
    // Predicated region
    $region14: #{tpu_custom_call.1} parent=1 // pred_check
      _
    $region15: #{tpu_custom_call.1} parent=1 // pred_check_branch
      %21 = sbr.rel (0) target = $region17
    $region16: #{tpu_custom_call.1} parent=1 // pred_region
      _
    $region17: #{tpu_custom_call.1} parent=1 // pred_fallthru
      _
    %v22 = vld [vmem:[%s2] sm:$0xff]
    %v23 = vld [vmem:[%s2 + $0x8] sm:$0xff]
    %v24 = vld [vmem:[%s2 + $0x10] sm:$0xff]
    %v25 = vld [vmem:[%s2 + $0x18] sm:$0xff]
    %v26 = vld [vmem:[%s2 + $0x20] sm:$0xff]
    %v27 = vld [vmem:[%s2 + $0x28] sm:$0xff]
    %v28 = vld [vmem:[%s2 + $0x30] sm:$0xff]
    %v29 = vld [vmem:[%s2 + $0x38] sm:$0xff]
    %v30 = vld [vmem:[%s2 + $0x40] sm:$0xff]
    %v31 = vld [vmem:[%s2 + $0x48] sm:$0xff]
    %v32 = vld [vmem:[%s2 + $0x50] sm:$0xff]
    %v33 = vld [vmem:[%s2 + $0x58] sm:$0xff]
    %v34 = vld [vmem:[%s2 + $0x60] sm:$0xff]
    %v35 = vld [vmem:[%s2 + $0x68] sm:$0xff]
    %v36 = vld [vmem:[%s2 + $0x70] sm:$0xff]
    %v37 = vld [vmem:[%s2 + $0x78] sm:$0xff]
    %v38 = vld [vmem:[%s2 + $0x80] sm:$0xff]
    %v39 = vld [vmem:[%s2 + $0x88] sm:$0xff]
    %v40 = vld [vmem:[%s2 + $0x90] sm:$0xff]
    %v41 = vld [vmem:[%s2 + $0x98] sm:$0xff]
    %v42 = vld [vmem:[%s2 + $0xa0] sm:$0xff]
    %v43 = vld [vmem:[%s3] sm:$0x3f]
    %v44 = vld [vmem:[%s0] sm:$0xff]
    %v45 = vperm.slane %v43, 0
    %vm46 = vcmask 523264
    %v48 = vsel %vm46, %v44, 0
    %50 = vmatpush.msra.mxu0 0.0
    %51 = vmatpush.msra.mxu0 0.0
    %52 = vmatpush.msra.mxu0 0.0
    %53 = vmatpush.msra.mxu0 0.0
    %54 = vmatpush.msra.mxu0 0.0
    %55 = vmatpush.msra.mxu0 0.0
    %56 = vmatpush.msra.mxu0 0.0
    %57 = vmatpush.msra.mxu0 0.0
    %58 = vmatpush.msra.mxu0 %v29
    %59 = vmatpush.msra.mxu0 %v28
    %60 = vmatpush.msra.mxu0 %v27
    %61 = vmatpush.msra.mxu0 %v26
    %62 = vmatpush.msra.mxu0 %v25
    %63 = vmatpush.msra.mxu0 %v24
    %64 = vmatpush.msra.mxu0 %v23
    %65 = vmatpush.msra.mxu0 %v22
    %66 = vmatmul.f32.gmra.mxu0 %v48
    %v67 = vpop.f32.mrf.mxu0
    %v68 = vadd.f32 %v45, %v67
    %69 = vdwg.mxu0
    %vm70 = vcmp.gt.f32.partialorder %v68, 0.0
    %v71 = vmul.f32 %v68, 0.01
    %v72 = vsel %vm70, %v68, %v71
    %v73 = vperm.slane %v43, 1
    %vm74 = vcmask 261120
    %v76 = vsel %vm74, %v72, 0
    %78 = vmatpush.msra.mxu0 0.0
    %79 = vmatpush.msra.mxu0 0.0
    %80 = vmatpush.msra.mxu0 0.0
    %81 = vmatpush.msra.mxu0 0.0
    %82 = vmatpush.msra.mxu0 0.0
    %83 = vmatpush.msra.mxu0 0.0
    %84 = vmatpush.msra.mxu0 0.0
    %85 = vmatpush.msra.mxu0 0.0
    %86 = vmatpush.msra.mxu0 0.0
    %87 = vmatpush.msra.mxu0 0.0
    %88 = vmatpush.msra.mxu0 0.0
    %89 = vmatpush.msra.mxu0 0.0
    %90 = vmatpush.msra.mxu0 %v33
    %91 = vmatpush.msra.mxu0 %v32
    %92 = vmatpush.msra.mxu0 %v31
    %93 = vmatpush.msra.mxu0 %v30
    %94 = vmatmul.f32.gmra.mxu0 %v76
    %v95 = vpop.f32.mrf.mxu0
    %v96 = vadd.f32 %v73, %v95
    %97 = vdwg.mxu0
    %vm98 = vcmp.gt.f32.partialorder %v96, 0.0
    %v99 = vmul.f32 %v96, 0.01
    %v100 = vsel %vm98, %v96, %v99
    %vm101 = vcmask 130048
    %102 = vst.msk [vmem:[#allocation6] sm:$0xff] %vm101, %v100
    %v103 = vperm.slane %v43, 2
    %v105 = vsel %vm101, %v100, 0
    %107 = vmatpush.msra.mxu0 0.0
    %108 = vmatpush.msra.mxu0 0.0
    %109 = vmatpush.msra.mxu0 0.0
    %110 = vmatpush.msra.mxu0 0.0
    %111 = vmatpush.msra.mxu0 0.0
    %112 = vmatpush.msra.mxu0 0.0
    %113 = vmatpush.msra.mxu0 0.0
    %114 = vmatpush.msra.mxu0 0.0
    %115 = vmatpush.msra.mxu0 0.0
    %116 = vmatpush.msra.mxu0 0.0
    %117 = vmatpush.msra.mxu0 0.0
    %118 = vmatpush.msra.mxu0 0.0
    %119 = vmatpush.msra.mxu0 0.0
    %120 = vmatpush.msra.mxu0 0.0
    %121 = vmatpush.msra.mxu0 %v35
    %122 = vmatpush.msra.mxu0 %v34
    %123 = vmatmul.f32.gmra.mxu0 %v105
    %v124 = vpop.f32.mrf.mxu0
    %v125 = vadd.f32 %v103, %v124
    %126 = vdwg.mxu0
    %127 = vst.msk [vmem:[#allocation2] sm:$0xff] %vm101, %v125
    %v128 = vld [vmem:[%s1] sm:$0xff]
    %v129 = vmul.f32 %v125, 0.5
    %v130 = vmul.f32 %v129, 1.442695
    %v131 = vpow.pop %v130
    %133 = vrot.lane.b32.xlu0 %v131, 120
    %v134 = vpop.permute.xlu0 %133
    %v136 = vmul.f32 %v128, %v134
    %v137 = vadd.f32 %v125, %v136
    %v138 = vperm.slane %v43, 3
    %vm139 = vcmask 64512
    %v141 = vsel %vm139, %v137, 0
    %143 = vmatpush.msra.mxu0 0.0
    %144 = vmatpush.msra.mxu0 0.0
    %145 = vmatpush.msra.mxu0 0.0
    %146 = vmatpush.msra.mxu0 0.0
    %147 = vmatpush.msra.mxu0 0.0
    %148 = vmatpush.msra.mxu0 0.0
    %149 = vmatpush.msra.mxu0 0.0
    %150 = vmatpush.msra.mxu0 0.0
    %151 = vmatpush.msra.mxu0 0.0
    %152 = vmatpush.msra.mxu0 0.0
    %153 = vmatpush.msra.mxu0 0.0
    %154 = vmatpush.msra.mxu0 0.0
    %155 = vmatpush.msra.mxu0 0.0
    %156 = vmatpush.msra.mxu0 0.0
    %157 = vmatpush.msra.mxu0 0.0
    %158 = vmatpush.msra.mxu0 %v36
    %159 = vmatmul.f32.gmra.mxu0 %v141
    %v160 = vpop.f32.mrf.mxu0
    %v161 = vadd.f32 %v138, %v160
    %162 = vdwg.mxu0
    %vm163 = vcmp.gt.f32.partialorder %v161, 0.0
    %v164 = vmul.f32 %v161, 0.01
    %v165 = vsel %vm163, %v161, %v164
    %v166 = vperm.slane %v43, 4
    %v168 = vsel %vm101, %v165, 0
    %170 = vmatpush.msra.mxu0 0.0
    %171 = vmatpush.msra.mxu0 0.0
    %172 = vmatpush.msra.mxu0 0.0
    %173 = vmatpush.msra.mxu0 0.0
    %174 = vmatpush.msra.mxu0 0.0
    %175 = vmatpush.msra.mxu0 0.0
    %176 = vmatpush.msra.mxu0 0.0
    %177 = vmatpush.msra.mxu0 0.0
    %178 = vmatpush.msra.mxu0 0.0
    %179 = vmatpush.msra.mxu0 0.0
    %180 = vmatpush.msra.mxu0 0.0
    %181 = vmatpush.msra.mxu0 0.0
    %182 = vmatpush.msra.mxu0 0.0
    %183 = vmatpush.msra.mxu0 0.0
    %184 = vmatpush.msra.mxu0 %v38
    %185 = vmatpush.msra.mxu0 %v37
    %186 = vmatmul.f32.gmra.mxu0 %v168
    %v187 = vpop.f32.mrf.mxu0
    %v188 = vadd.f32 %v166, %v187
    %189 = vdwg.mxu0
    %vm190 = vcmp.gt.f32.partialorder %v188, 0.0
    %v191 = vmul.f32 %v188, 0.01
    %v192 = vsel %vm190, %v188, %v191
    %v193 = vperm.slane %v43, 5
    %v195 = vsel %vm74, %v192, 0
    %197 = vmatpush.msra.mxu0 0.0
    %198 = vmatpush.msra.mxu0 0.0
    %199 = vmatpush.msra.mxu0 0.0
    %200 = vmatpush.msra.mxu0 0.0
    %201 = vmatpush.msra.mxu0 0.0
    %202 = vmatpush.msra.mxu0 0.0
    %203 = vmatpush.msra.mxu0 0.0
    %204 = vmatpush.msra.mxu0 0.0
    %205 = vmatpush.msra.mxu0 0.0
    %206 = vmatpush.msra.mxu0 0.0
    %207 = vmatpush.msra.mxu0 0.0
    %208 = vmatpush.msra.mxu0 0.0
    %209 = vmatpush.msra.mxu0 %v42
    %210 = vmatpush.msra.mxu0 %v41
    %211 = vmatpush.msra.mxu0 %v40
    %212 = vmatpush.msra.mxu0 %v39
    %213 = vmatmul.f32.gmra.mxu0 %v195
    %v214 = vpop.f32.mrf.mxu0
    %v215 = vadd.f32 %v193, %v214
    %216 = vdwg.mxu0
    %217 = vst.msk [vmem:[#allocation4] sm:$0xff] %vm46, %v215
    // Predicated region
    $region18: #{tpu_custom_call.1} parent=1 // pred_check
      _
    $region19: #{tpu_custom_call.1} parent=1 // pred_check_branch
      %219 = sbr.rel (0) target = $region21
    $region20: #{tpu_custom_call.1} parent=1 // pred_region
      %221 = vsyncadd [#allocation3], 0
      %s223 = sshll.u32 [#allocation2], 4
      %s224 = int_to_ptr.vmem [resolvable:$true] %s223
      %s225 = sshll.u32 %s4, 4
      %s226 = int_to_ptr.hbm [resolvable:$true] %s225
      %228 = dma.vmem_to_hbm [thread:$0]  %s224, 128, %s226, [#allocation3]
    $region21: #{tpu_custom_call.1} parent=1 // pred_fallthru
      _
    // Predicated region
    $region22: #{tpu_custom_call.1} parent=1 // pred_check
      _
    $region23: #{tpu_custom_call.1} parent=1 // pred_check_branch
      %230 = sbr.rel (0) target = $region25
    $region24: #{tpu_custom_call.1} parent=1 // pred_region
      %232 = vsyncadd [#allocation5], 0
      %s234 = sshll.u32 [#allocation4], 4
      %s235 = int_to_ptr.vmem [resolvable:$true] %s234
      %s236 = sshll.u32 %s5, 4
      %s237 = int_to_ptr.hbm [resolvable:$true] %s236
      %239 = dma.vmem_to_hbm [thread:$0]  %s235, 128, %s237, [#allocation5]
    $region25: #{tpu_custom_call.1} parent=1 // pred_fallthru
      _
    // Predicated region
    $region26: #{tpu_custom_call.1} parent=1 // pred_check
      _
    $region27: #{tpu_custom_call.1} parent=1 // pred_check_branch
      %241 = sbr.rel (0) target = $region29
    $region28: #{tpu_custom_call.1} parent=1 // pred_region
      %243 = vsyncadd [#allocation5], 0
      %s245 = sshll.u32 [#allocation6], 4
      %s246 = int_to_ptr.vmem [resolvable:$true] %s245
      %s247 = sshll.u32 %s6, 4
      %s248 = int_to_ptr.hbm [resolvable:$true] %s247
      %250 = dma.vmem_to_hbm [thread:$0]  %s246, 128, %s248, [#allocation5]
    $region29: #{tpu_custom_call.1} parent=1 // pred_fallthru
      _
    // Predicated region
    $region30: #{tpu_custom_call.1} parent=1 // pred_check
      _
    $region31: #{tpu_custom_call.1} parent=1 // pred_check_branch
      %252 = sbr.rel (0) target = $region33
    $region32: #{tpu_custom_call.1} parent=1 // pred_region
      %254 = dma.done [#allocation3], 128
    $region33: #{tpu_custom_call.1} parent=1 // pred_fallthru
      _
    // Predicated region
    $region34: #{tpu_custom_call.1} parent=1 // pred_check
      _
    $region35: #{tpu_custom_call.1} parent=1 // pred_check_branch
      %256 = sbr.rel (0) target = $region37
    $region36: #{tpu_custom_call.1} parent=1 // pred_region
      %258 = dma.done [#allocation5], 128
    $region37: #{tpu_custom_call.1} parent=1 // pred_fallthru
      _
    // Predicated region
    $region38: #{tpu_custom_call.1} parent=1 // pred_check
      _
    $region39: #{tpu_custom_call.1} parent=1 // pred_check_branch
      %260 = sbr.rel (0) target = $region41
    $region40: #{tpu_custom_call.1} parent=1 // pred_region
      %262 = dma.done [#allocation5], 128
    $region41: #{tpu_custom_call.1} parent=1 // pred_fallthru
      _
    %263 = vsyncpa [#allocation3], 1
    %264 = vsyncpa [#allocation5], 1

</llo_original>
